<compile_context>
chip_gen: v7x
topology: tpu7x:2x2x1
jax: 0.10.0
libtpu: 0.0.40
codegen_flags: <defaults>
</compile_context>

<pallas_src>
import functools

import jax
import jax.numpy as jnp
from jax.experimental import pallas as pl
from jax.experimental.pallas import tpu as pltpu


def _round_up(x, m):
    return (x + m - 1) // m * m


def convnet_kernel(x_ref, wt_ref, bc_ref, w1_ref, b1_ref, w2_ref, b2_ref,
                   w3_ref, b3_ref, out_ref, *, width, nfilters, poolsize):
    F, L, P = nfilters, width, poolsize
    Lp = L // P

    # ---- Conv1d + bias + ReLU as one block-Toeplitz matmul ----
    #   (L*F, Lpad*C) @ (Lpad*C, b_tile) -> (L*F, b_tile), f32 accumulation.
    # Row index of the result is l*F + f (length-major, filter-minor); batch is
    # on the lane axis.
    conv = jnp.dot(wt_ref[...], x_ref[...], preferred_element_type=jnp.float32)
    conv = jnp.maximum(conv + bc_ref[...], 0.0)          # bias + ReLU (f32 VPU)

    # ---- MaxPool1d(poolsize) + flatten, on values ----
    # Each pool window is P consecutive F-row slabs (whole vreg rows: static
    # sublane slices), reduced with VPU max and re-concatenated densely so row
    # j*F + f of `pooled` is pooled position j, filter f.  w1 was pre-permuted
    # in the wrapper to match torch's (f-major, j-minor) flatten order.
    chunks = []
    for j in range(Lp):
        m = conv[(j * P) * F:(j * P + 1) * F, :]
        for k in range(1, P):
            m = jnp.maximum(m, conv[(j * P + k) * F:(j * P + k + 1) * F, :])
        chunks.append(m)
    pooled = jnp.concatenate(chunks, axis=0) if Lp > 1 else chunks[0]

    # TODO(synk): nn.Dropout(0.8) treated as identity (eval-mode semantics).
    cd = w1_ref.dtype     # MXU operand dtype (bf16 fast path, or f32)
    h = jnp.dot(w1_ref[...], pooled.astype(cd),
                preferred_element_type=jnp.float32) + b1_ref[...]
    h = jnp.maximum(h, 0.0)                              # ReLU(fc1)
    h = jnp.dot(w2_ref[...], h.astype(cd),
                preferred_element_type=jnp.float32) + b2_ref[...]
    h = jnp.maximum(h, 0.0)                              # ReLU(fc2)
    # fc3: (no, n2) @ (n2, b_tile) -> lane-dense (no, b_tile) output block.
    out_ref[...] = jnp.dot(w3_ref[...], h.astype(cd),
                           preferred_element_type=jnp.float32) + b3_ref[...]


def convnet_forward(x_ncl, params, *, padding, poolsize,
                    compute_dtype=jnp.bfloat16, b_tile=512):
    """Fused ConvNetModel forward pass (eval mode) as one Pallas kernel."""
    wc, bc, w1, b1, w2, b2, w3, b3 = params        # torch-layout parameters
    B, C, L = x_ncl.shape
    F, _, K = wc.shape
    n1, n2, no = w1.shape[0], w2.shape[0], w3.shape[0]
    Lp = L // poolsize
    Lpad = L + 2 * padding

    # The Toeplitz construction assumes conv output length == L (stride 1).
    assert K == 2 * padding + 1, "requires filtsize == 2*padding + 1 (stride 1)"
    assert L % poolsize == 0, "requires width divisible by poolsize"

    # Batch tiling: b_tile is a multiple of 128 (lane-dense blocks); cap it so
    # big-enough batches get >= 2 grid steps (v7x: both TCs busy).
    b_tile = _round_up(max(1, b_tile), 128)
    b_tile = max(128, min(b_tile, _round_up(pl.cdiv(B, 2), 128)))
    Bp = _round_up(B, b_tile)
    num_tiles = Bp // b_tile

    # Glue (XLA side, one pass): NCL -> (L, C, B), zero-pad length + batch,
    # flatten to (Lpad*C, Bp).  xt[l*C + c, b] = x_padded[b, c, l].
    x = jnp.transpose(x_ncl, (2, 1, 0)).astype(jnp.float32)
    x = jnp.pad(x, ((padding, padding), (0, 0), (0, Bp - B)))
    xt = x.reshape(Lpad * C, Bp).astype(compute_dtype)

    # ---- Parameter re-layouts (once, outside the kernel) ----
    # Block-Toeplitz conv weight:
    #   wt_k[lo*F + f, li*C + c] = wc[f, c, li - lo] if 0 <= li - lo < K else 0.
    k_idx = jnp.arange(Lpad)[:, None] - jnp.arange(L)[None, :]      # (Lpad, L)
    valid = (k_idx >= 0) & (k_idx < K)
    k_cl = jnp.clip(k_idx, 0, K - 1)
    wt = wc[:, :, k_cl]                                  # (F, C, Lpad, L)
    wt = jnp.where(valid[None, None, :, :], wt, 0.0)
    wt_k = (jnp.transpose(wt, (3, 0, 2, 1))              # (L, F, Lpad, C)
            .reshape(L * F, Lpad * C).astype(compute_dtype))
    bc_k = jnp.tile(bc, L).reshape(L * F, 1).astype(jnp.float32)

    # torch flattens pooled (B, F, Lp) as f*Lp + j; the kernel builds j*F + f.
    w1_k = (jnp.transpose(w1.reshape(n1, F, Lp), (0, 2, 1))
            .reshape(n1, Lp * F).astype(compute_dtype))
    b1_k = b1.reshape(n1, 1).astype(jnp.float32)
    w2_k = w2.astype(compute_dtype)                      # (n2, n1), as-is
    b2_k = b2.reshape(n2, 1).astype(jnp.float32)
    w3_k = w3.astype(compute_dtype)                      # (no, n2), as-is
    b3_k = b3.reshape(no, 1).astype(jnp.float32)

    kernel = functools.partial(convnet_kernel, width=L, nfilters=F,
                               poolsize=poolsize)

    out = pl.pallas_call(
        kernel,
        out_shape=jax.ShapeDtypeStruct((no, Bp), jnp.float32),
        grid=(num_tiles,),
        in_specs=[
            pl.BlockSpec((Lpad * C, b_tile), lambda i: (0, i)),   # input slab
            pl.BlockSpec((L * F, Lpad * C), lambda i: (0, 0)),    # Toeplitz conv W
            pl.BlockSpec((L * F, 1), lambda i: (0, 0)),
            pl.BlockSpec((n1, Lp * F), lambda i: (0, 0)),
            pl.BlockSpec((n1, 1), lambda i: (0, 0)),
            pl.BlockSpec((n2, n1), lambda i: (0, 0)),
            pl.BlockSpec((n2, 1), lambda i: (0, 0)),
            pl.BlockSpec((no, n2), lambda i: (0, 0)),
            pl.BlockSpec((no, 1), lambda i: (0, 0)),
        ],
        out_specs=pl.BlockSpec((no, b_tile), lambda i: (0, i)),   # lane-dense
        compiler_params=pltpu.CompilerParams(
            dimension_semantics=("parallel",),   # v7x: both TCs split tiles
            vmem_limit_bytes=32 * 1024 * 1024),
    )(xt, wt_k, bc_k, w1_k, b1_k, w2_k, b2_k, w3_k, b3_k)

    out = out[:, :B]                     # drop batch padding
    # torch: x.squeeze(-1)
    return out[0] if no == 1 else out.T


def reference_forward(x_ncl, params, *, padding, poolsize):
    """Pure-JAX reference mirroring the PyTorch forward (eval mode)."""
    wc, bc, w1, b1, w2, b2, w3, b3 = params
    y = jax.lax.conv_general_dilated(
        x_ncl, wc, window_strides=(1,), padding=[(padding, padding)],
        dimension_numbers=("NCH", "OIH", "NCH"))
    y = jnp.maximum(y + bc[None, :, None], 0.0)
    B, F, L = y.shape
    y = jnp.max(y.reshape(B, F, L // poolsize, poolsize), axis=-1)
    flat = y.reshape(B, -1)
    h = jnp.maximum(flat @ w1.T + b1, 0.0)
    h = jnp.maximum(h @ w2.T + b2, 0.0)
    out = h @ w3.T + b3
    return jnp.squeeze(out, -1) if out.shape[-1] == 1 else out


def init_params(key, width, nhistones, nfilters, filtsize, poolsize,
                n1, n2, noutputs):
    """Deterministic torch-style uniform init (shapes match the nn.Module)."""
    ks = jax.random.split(key, 8)
    flat_in = int(width * nfilters // poolsize)

    def u(k, shape, fan_in):
        bound = 1.0 / (fan_in ** 0.5)
        return jax.random.uniform(k, shape, jnp.float32, -bound, bound)

    wc = u(ks[0], (nfilters, nhistones, filtsize), nhistones * filtsize)
    bc = u(ks[1], (nfilters,), nhistones * filtsize)
    w1 = u(ks[2], (n1, flat_in), flat_in)
    b1 = u(ks[3], (n1,), flat_in)
    w2 = u(ks[4], (n2, n1), n1)
    b2 = u(ks[5], (n2,), n1)
    w3 = u(ks[6], (noutputs, n2), n2)
    b3 = u(ks[7], (noutputs,), n2)
    return wc, bc, w1, b1, w2, b2, w3, b3


if __name__ == "__main__":
    # Shapes consistent with ConvNetModel(width=16, nhistones=4, nfilters=8,
    # filtsize=3, padding=1, poolsize=2, 32, 16, 1).
    width, nhistones, nfilters, filtsize = 16, 4, 8, 3
    padding, poolsize = 1, 2
    n_states_linear1, n_states_linear2, noutputs = 32, 16, 1

    key = jax.random.PRNGKey(0)
    kx, kp, kx2 = jax.random.split(key, 3)
    params = init_params(kp, width, nhistones, nfilters, filtsize, poolsize,
                         n_states_linear1, n_states_linear2, noutputs)

    # Small batch (B=2): single grid step; f32 operands -> tight tolerance.
    x = jax.random.normal(kx, (2, nhistones, width), jnp.float32)     # NCL
    ref = reference_forward(x, params, padding=padding, poolsize=poolsize)

    out_f32 = jax.block_until_ready(
        convnet_forward(x, params, padding=padding, poolsize=poolsize,
                        compute_dtype=jnp.float32))
    assert out_f32.shape == ref.shape == (2,), (out_f32.shape, ref.shape)
    assert jnp.allclose(out_f32, ref, rtol=1e-3, atol=1e-3), (out_f32, ref)

    # Default bf16 MXU operands (all generations), f32 accumulation -> looser
    # check (input quantization, not just MXU rounding).
    out_bf16 = jax.block_until_ready(
        convnet_forward(x, params, padding=padding, poolsize=poolsize))
    assert jnp.allclose(out_bf16, ref, rtol=5e-2, atol=5e-2), (out_bf16, ref)

    # Larger, non-aligned batch: exercises batch padding, b_tile capping and a
    # multi-step "parallel" grid (2 tiles of 256).
    xb = jax.random.normal(kx2, (300, nhistones, width), jnp.float32)
    refb = reference_forward(xb, params, padding=padding, poolsize=poolsize)
    outb = jax.block_until_ready(
        convnet_forward(xb, params, padding=padding, poolsize=poolsize,
                        compute_dtype=jnp.float32))
    assert outb.shape == refb.shape == (300,), (outb.shape, refb.shape)
    assert jnp.allclose(outb, refb, rtol=1e-3, atol=1e-3)

    print("KERNEL_OK")
</pallas_src>

<mosaic_0001>
module attributes {stable_mosaic.version = 11 : i64} {
  func.func @convnet_kernel(%arg0: i32, %arg1: memref<72x128xf32, #tpu.memory_space<vmem>>, %arg2: memref<128x72xf32, #tpu.memory_space<vmem>>, %arg3: memref<128x1xf32, #tpu.memory_space<vmem>>, %arg4: memref<32x64xf32, #tpu.memory_space<vmem>>, %arg5: memref<32x1xf32, #tpu.memory_space<vmem>>, %arg6: memref<16x32xf32, #tpu.memory_space<vmem>>, %arg7: memref<16x1xf32, #tpu.memory_space<vmem>>, %arg8: memref<1x16xf32, #tpu.memory_space<vmem>>, %arg9: memref<1x1xf32, #tpu.memory_space<vmem>>, %arg10: memref<1x128xf32, #tpu.memory_space<vmem>>) attributes {dimension_semantics = [#tpu.dimension_semantics<parallel>], iteration_bounds = array<i64: 1>, scalar_prefetch = 0 : i64, scratch_operands = 0 : i64, tpu.core_type = #tpu.core_type<tc>, window_params = [{transform_indices = @transform_0, window_bounds = array<i64: 72, 128>}, {pipeline_mode = #tpu.pipeline_mode<synchronous>, transform_indices = @transform_1, window_bounds = array<i64: 128, 72>}, {pipeline_mode = #tpu.pipeline_mode<synchronous>, transform_indices = @transform_2, window_bounds = array<i64: 128, 1>}, {pipeline_mode = #tpu.pipeline_mode<synchronous>, transform_indices = @transform_3, window_bounds = array<i64: 32, 64>}, {pipeline_mode = #tpu.pipeline_mode<synchronous>, transform_indices = @transform_4, window_bounds = array<i64: 32, 1>}, {pipeline_mode = #tpu.pipeline_mode<synchronous>, transform_indices = @transform_5, window_bounds = array<i64: 16, 32>}, {pipeline_mode = #tpu.pipeline_mode<synchronous>, transform_indices = @transform_6, window_bounds = array<i64: 16, 1>}, {pipeline_mode = #tpu.pipeline_mode<synchronous>, transform_indices = @transform_7, window_bounds = array<i64: 1, 16>}, {pipeline_mode = #tpu.pipeline_mode<synchronous>, transform_indices = @transform_8, window_bounds = array<i64: 1, 1>}, {transform_indices = @transform_9, window_bounds = array<i64: 1, 128>}]} {
    %c0 = arith.constant 0 : index
    %c0_0 = arith.constant 0 : index
    %0 = vector.load %arg2[%c0, %c0_0] : memref<128x72xf32, #tpu.memory_space<vmem>>, vector<128x72xf32>
    %c0_1 = arith.constant 0 : index
    %c0_2 = arith.constant 0 : index
    %1 = vector.load %arg1[%c0_1, %c0_2] : memref<72x128xf32, #tpu.memory_space<vmem>>, vector<72x128xf32>
    %cst = arith.constant dense<0.000000e+00> : vector<128x128xf32>
    %2 = tpu.matmul %0, %1, %cst {dimension_numbers = #tpu.dot_dimension_numbers<[1], [0], [0], [1], [0, 0, 1, 1], [], []>} : vector<128x72xf32>, vector<72x128xf32>, vector<128x128xf32> -> vector<128x128xf32>
    %c0_3 = arith.constant 0 : index
    %c0_4 = arith.constant 0 : index
    %3 = vector.load %arg3[%c0_3, %c0_4] : memref<128x1xf32, #tpu.memory_space<vmem>>, vector<128x1xf32>
    %4 = vector.broadcast %3 : vector<128x1xf32> to vector<128x128xf32>
    %5 = arith.addf %2, %4 : vector<128x128xf32>
    %cst_5 = arith.constant 0.000000e+00 : f32
    %6 = vector.broadcast %cst_5 : f32 to vector<128x128xf32>
    %7 = arith.maximumf %5, %6 : vector<128x128xf32>
    %8 = vector.extract_strided_slice %7 {offsets = [0, 0], sizes = [8, 128], strides = [1, 1]} : vector<128x128xf32> to vector<8x128xf32>
    %9 = vector.extract_strided_slice %7 {offsets = [8, 0], sizes = [8, 128], strides = [1, 1]} : vector<128x128xf32> to vector<8x128xf32>
    %10 = arith.maximumf %8, %9 : vector<8x128xf32>
    %11 = vector.extract_strided_slice %7 {offsets = [16, 0], sizes = [8, 128], strides = [1, 1]} : vector<128x128xf32> to vector<8x128xf32>
    %12 = vector.extract_strided_slice %7 {offsets = [24, 0], sizes = [8, 128], strides = [1, 1]} : vector<128x128xf32> to vector<8x128xf32>
    %13 = arith.maximumf %11, %12 : vector<8x128xf32>
    %14 = vector.extract_strided_slice %7 {offsets = [32, 0], sizes = [8, 128], strides = [1, 1]} : vector<128x128xf32> to vector<8x128xf32>
    %15 = vector.extract_strided_slice %7 {offsets = [40, 0], sizes = [8, 128], strides = [1, 1]} : vector<128x128xf32> to vector<8x128xf32>
    %16 = arith.maximumf %14, %15 : vector<8x128xf32>
    %17 = vector.extract_strided_slice %7 {offsets = [48, 0], sizes = [8, 128], strides = [1, 1]} : vector<128x128xf32> to vector<8x128xf32>
    %18 = vector.extract_strided_slice %7 {offsets = [56, 0], sizes = [8, 128], strides = [1, 1]} : vector<128x128xf32> to vector<8x128xf32>
    %19 = arith.maximumf %17, %18 : vector<8x128xf32>
    %20 = vector.extract_strided_slice %7 {offsets = [64, 0], sizes = [8, 128], strides = [1, 1]} : vector<128x128xf32> to vector<8x128xf32>
    %21 = vector.extract_strided_slice %7 {offsets = [72, 0], sizes = [8, 128], strides = [1, 1]} : vector<128x128xf32> to vector<8x128xf32>
    %22 = arith.maximumf %20, %21 : vector<8x128xf32>
    %23 = vector.extract_strided_slice %7 {offsets = [80, 0], sizes = [8, 128], strides = [1, 1]} : vector<128x128xf32> to vector<8x128xf32>
    %24 = vector.extract_strided_slice %7 {offsets = [88, 0], sizes = [8, 128], strides = [1, 1]} : vector<128x128xf32> to vector<8x128xf32>
    %25 = arith.maximumf %23, %24 : vector<8x128xf32>
    %26 = vector.extract_strided_slice %7 {offsets = [96, 0], sizes = [8, 128], strides = [1, 1]} : vector<128x128xf32> to vector<8x128xf32>
    %27 = vector.extract_strided_slice %7 {offsets = [104, 0], sizes = [8, 128], strides = [1, 1]} : vector<128x128xf32> to vector<8x128xf32>
    %28 = arith.maximumf %26, %27 : vector<8x128xf32>
    %29 = vector.extract_strided_slice %7 {offsets = [112, 0], sizes = [8, 128], strides = [1, 1]} : vector<128x128xf32> to vector<8x128xf32>
    %30 = vector.extract_strided_slice %7 {offsets = [120, 0], sizes = [8, 128], strides = [1, 1]} : vector<128x128xf32> to vector<8x128xf32>
    %31 = arith.maximumf %29, %30 : vector<8x128xf32>
    %32 = tpu.concatenate %10, %13, %16, %19, %22, %25, %28, %31 in 0 : vector<8x128xf32>, vector<8x128xf32>, vector<8x128xf32>, vector<8x128xf32>, vector<8x128xf32>, vector<8x128xf32>, vector<8x128xf32>, vector<8x128xf32> -> vector<64x128xf32>
    %c0_6 = arith.constant 0 : index
    %c0_7 = arith.constant 0 : index
    %33 = vector.load %arg4[%c0_6, %c0_7] : memref<32x64xf32, #tpu.memory_space<vmem>>, vector<32x64xf32>
    %cst_8 = arith.constant dense<0.000000e+00> : vector<32x128xf32>
    %34 = tpu.matmul %33, %32, %cst_8 {dimension_numbers = #tpu.dot_dimension_numbers<[1], [0], [0], [1], [0, 0, 1, 1], [], []>} : vector<32x64xf32>, vector<64x128xf32>, vector<32x128xf32> -> vector<32x128xf32>
    %c0_9 = arith.constant 0 : index
    %c0_10 = arith.constant 0 : index
    %35 = vector.load %arg5[%c0_9, %c0_10] : memref<32x1xf32, #tpu.memory_space<vmem>>, vector<32x1xf32>
    %36 = vector.broadcast %35 : vector<32x1xf32> to vector<32x128xf32>
    %37 = arith.addf %34, %36 : vector<32x128xf32>
    %cst_11 = arith.constant 0.000000e+00 : f32
    %38 = vector.broadcast %cst_11 : f32 to vector<32x128xf32>
    %39 = arith.maximumf %37, %38 : vector<32x128xf32>
    %c0_12 = arith.constant 0 : index
    %c0_13 = arith.constant 0 : index
    %40 = vector.load %arg6[%c0_12, %c0_13] : memref<16x32xf32, #tpu.memory_space<vmem>>, vector<16x32xf32>
    %cst_14 = arith.constant dense<0.000000e+00> : vector<16x128xf32>
    %41 = tpu.matmul %40, %39, %cst_14 {dimension_numbers = #tpu.dot_dimension_numbers<[1], [0], [0], [1], [0, 0, 1, 1], [], []>} : vector<16x32xf32>, vector<32x128xf32>, vector<16x128xf32> -> vector<16x128xf32>
    %c0_15 = arith.constant 0 : index
    %c0_16 = arith.constant 0 : index
    %42 = vector.load %arg7[%c0_15, %c0_16] : memref<16x1xf32, #tpu.memory_space<vmem>>, vector<16x1xf32>
    %43 = vector.broadcast %42 : vector<16x1xf32> to vector<16x128xf32>
    %44 = arith.addf %41, %43 : vector<16x128xf32>
    %cst_17 = arith.constant 0.000000e+00 : f32
    %45 = vector.broadcast %cst_17 : f32 to vector<16x128xf32>
    %46 = arith.maximumf %44, %45 : vector<16x128xf32>
    %c0_18 = arith.constant 0 : index
    %c0_19 = arith.constant 0 : index
    %47 = vector.load %arg8[%c0_18, %c0_19] : memref<1x16xf32, #tpu.memory_space<vmem>>, vector<1x16xf32>
    %cst_20 = arith.constant dense<0.000000e+00> : vector<1x128xf32>
    %48 = tpu.matmul %47, %46, %cst_20 {dimension_numbers = #tpu.dot_dimension_numbers<[1], [0], [0], [1], [0, 0, 1, 1], [], []>} : vector<1x16xf32>, vector<16x128xf32>, vector<1x128xf32> -> vector<1x128xf32>
    %c0_21 = arith.constant 0 : index
    %c0_22 = arith.constant 0 : index
    %49 = vector.load %arg9[%c0_21, %c0_22] : memref<1x1xf32, #tpu.memory_space<vmem>>, vector<1x1xf32>
    %50 = vector.broadcast %49 : vector<1x1xf32> to vector<1x128xf32>
    %51 = arith.addf %48, %50 : vector<1x128xf32>
    %c0_23 = arith.constant 0 : index
    %c0_24 = arith.constant 0 : index
    %52 = vector.load %arg10[%c0_23, %c0_24] : memref<1x128xf32, #tpu.memory_space<vmem>>, vector<1x128xf32>
    tpu.vector_store %arg10[%c0_23, %c0_24], %51 {strides = array<i32>} : memref<1x128xf32, #tpu.memory_space<vmem>>, vector<1x128xf32>,
    return
  }
  func.func @transform_0(%arg0: i32) -> (i32, i32) {
    %c0_i32 = arith.constant 0 : i32
    %c0_i32_0 = arith.constant 0 : i32
    return %c0_i32, %arg0 : i32, i32
  }
  func.func @transform_1(%arg0: i32) -> (i32, i32) {
    %c0_i32 = arith.constant 0 : i32
    %c0_i32_0 = arith.constant 0 : i32
    %c0_i32_1 = arith.constant 0 : i32
    return %c0_i32, %c0_i32_0 : i32, i32
  }
  func.func @transform_2(%arg0: i32) -> (i32, i32) {
    %c0_i32 = arith.constant 0 : i32
    %c0_i32_0 = arith.constant 0 : i32
    %c0_i32_1 = arith.constant 0 : i32
    return %c0_i32, %c0_i32_0 : i32, i32
  }
  func.func @transform_3(%arg0: i32) -> (i32, i32) {
    %c0_i32 = arith.constant 0 : i32
    %c0_i32_0 = arith.constant 0 : i32
    %c0_i32_1 = arith.constant 0 : i32
    return %c0_i32, %c0_i32_0 : i32, i32
  }
  func.func @transform_4(%arg0: i32) -> (i32, i32) {
    %c0_i32 = arith.constant 0 : i32
    %c0_i32_0 = arith.constant 0 : i32
    %c0_i32_1 = arith.constant 0 : i32
    return %c0_i32, %c0_i32_0 : i32, i32
  }
  func.func @transform_5(%arg0: i32) -> (i32, i32) {
    %c0_i32 = arith.constant 0 : i32
    %c0_i32_0 = arith.constant 0 : i32
    %c0_i32_1 = arith.constant 0 : i32
    return %c0_i32, %c0_i32_0 : i32, i32
  }
  func.func @transform_6(%arg0: i32) -> (i32, i32) {
    %c0_i32 = arith.constant 0 : i32
    %c0_i32_0 = arith.constant 0 : i32
    %c0_i32_1 = arith.constant 0 : i32
    return %c0_i32, %c0_i32_0 : i32, i32
  }
  func.func @transform_7(%arg0: i32) -> (i32, i32) {
    %c0_i32 = arith.constant 0 : i32
    %c0_i32_0 = arith.constant 0 : i32
    %c0_i32_1 = arith.constant 0 : i32
    return %c0_i32, %c0_i32_0 : i32, i32
  }
  func.func @transform_8(%arg0: i32) -> (i32, i32) {
    %c0_i32 = arith.constant 0 : i32
    %c0_i32_0 = arith.constant 0 : i32
    %c0_i32_1 = arith.constant 0 : i32
    return %c0_i32, %c0_i32_0 : i32, i32
  }
  func.func @transform_9(%arg0: i32) -> (i32, i32) {
    %c0_i32 = arith.constant 0 : i32
    %c0_i32_0 = arith.constant 0 : i32
    return %c0_i32, %arg0 : i32, i32
  }
}

</mosaic_0001>

<llo_original>
// kernel: tpu_custom_call.1
$region0: #{tpu_custom_call.1}
  #allocation0 [shape = 'u32[]', space=smem, size = 0x4, offset = 0x4, fixed_abs, tag = 'smem constant byte address 0x4 - core index']
  #allocation1 [shape = 'u32[144,128]{1,0:T(1,128)}', space=vmem, size = 0x12000, scoped, tag = 'internal scratch']
  #allocation2 [shape = 'f32[1,1]{1,0:T(1,128)S(1)}', space=vmem, size = 0x200, scoped, tag = 'scoped memory for tpu_custom_call.1']
  %s0 = inlined_call_operand.vmem [shape: f32[72,128], index: 0, kind: input, shape index: {}]
  %s1 = inlined_call_operand.vmem [shape: f32[128,72], index: 1, kind: input, shape index: {}]
  %s2 = inlined_call_operand.vmem [shape: f32[128,1], index: 2, kind: input, shape index: {}]
  %s3 = inlined_call_operand.vmem [shape: f32[32,64], index: 3, kind: input, shape index: {}]
  %s4 = inlined_call_operand.vmem [shape: f32[32,1], index: 4, kind: input, shape index: {}]
  %s5 = inlined_call_operand.vmem [shape: f32[16,32], index: 5, kind: input, shape index: {}]
  %s6 = inlined_call_operand.vmem [shape: f32[16,1], index: 6, kind: input, shape index: {}]
  %s7 = inlined_call_operand.vmem [shape: f32[1,16], index: 7, kind: input, shape index: {}]
  %s8 = inlined_call_operand.<no memory space> [shape: f32[1,1], index: 8, kind: input, shape index: {}]
  %s9 = inlined_call_operand.hbm [shape: f32[1,128], index: 9, kind: output, shape index: {}]
  %s10 = sld [smem:[#allocation0]]
  $region46: #{tpu_custom_call.1} parent=0
    _
  %s12 = ssub.s32 1, %s10
  %s13 = scalar_select 0, %s12, %s10
  %v14 = vstv %s8
  %15 = vst [vmem:[#allocation2] sm:$0x1] %v14
  $region1: #{tpu_custom_call.1} parent=0
    #allocation3 [shape = 'u8[512]{0}', space=vmem, size = 0x400, scoped, tag = 'output window, operand 0, single buffered']
    #allocation4 [shape = 's32[1]{0}', space=sflag, size = 0x4, scoped, tag = 'scoped memory for tpu_custom_call.1']
    %16 = vsyncpa [#allocation4], 0
    // Predicated region
    $region2: #{tpu_custom_call.1} parent=1 // pred_check
      _
    $region3: #{tpu_custom_call.1} parent=1 // pred_check_branch
      %18 = sbr.rel (0) target = $region5
    $region4: #{tpu_custom_call.1} parent=1 // pred_region
      _
    $region5: #{tpu_custom_call.1} parent=1 // pred_fallthru
      _
    // Predicated region
    $region6: #{tpu_custom_call.1} parent=1 // pred_check
      _
    $region7: #{tpu_custom_call.1} parent=1 // pred_check_branch
      %20 = sbr.rel (0) target = $region9
    $region8: #{tpu_custom_call.1} parent=1 // pred_region
      _
    $region9: #{tpu_custom_call.1} parent=1 // pred_fallthru
      _
    // Predicated region
    $region10: #{tpu_custom_call.1} parent=1 // pred_check
      _
    $region11: #{tpu_custom_call.1} parent=1 // pred_check_branch
      %22 = sbr.rel (0) target = $region13
    $region12: #{tpu_custom_call.1} parent=1 // pred_region
      _
    $region13: #{tpu_custom_call.1} parent=1 // pred_fallthru
      _
    // Predicated region
    $region14: #{tpu_custom_call.1} parent=1 // pred_check
      _
    $region15: #{tpu_custom_call.1} parent=1 // pred_check_branch
      %24 = sbr.rel (0) target = $region17
    $region16: #{tpu_custom_call.1} parent=1 // pred_region
      _
    $region17: #{tpu_custom_call.1} parent=1 // pred_fallthru
      _
    // Predicated region
    $region18: #{tpu_custom_call.1} parent=1 // pred_check
      _
    $region19: #{tpu_custom_call.1} parent=1 // pred_check_branch
      %26 = sbr.rel (0) target = $region21
    $region20: #{tpu_custom_call.1} parent=1 // pred_region
      _
    $region21: #{tpu_custom_call.1} parent=1 // pred_fallthru
      _
    // Predicated region
    $region22: #{tpu_custom_call.1} parent=1 // pred_check
      _
    $region23: #{tpu_custom_call.1} parent=1 // pred_check_branch
      %28 = sbr.rel (0) target = $region25
    $region24: #{tpu_custom_call.1} parent=1 // pred_region
      _
    $region25: #{tpu_custom_call.1} parent=1 // pred_fallthru
      _
    // Predicated region
    $region26: #{tpu_custom_call.1} parent=1 // pred_check
      _
    $region27: #{tpu_custom_call.1} parent=1 // pred_check_branch
      %30 = sbr.rel (0) target = $region29
    $region28: #{tpu_custom_call.1} parent=1 // pred_region
      _
    $region29: #{tpu_custom_call.1} parent=1 // pred_fallthru
      _
    // Predicated region
    $region30: #{tpu_custom_call.1} parent=1 // pred_check
      _
    $region31: #{tpu_custom_call.1} parent=1 // pred_check_branch
      %32 = sbr.rel (0) target = $region33
    $region32: #{tpu_custom_call.1} parent=1 // pred_region
      _
    $region33: #{tpu_custom_call.1} parent=1 // pred_fallthru
      _
    // Predicated region
    $region34: #{tpu_custom_call.1} parent=1 // pred_check
      _
    $region35: #{tpu_custom_call.1} parent=1 // pred_check_branch
      %34 = sbr.rel (0) target = $region37
    $region36: #{tpu_custom_call.1} parent=1 // pred_region
      _
    $region37: #{tpu_custom_call.1} parent=1 // pred_fallthru
      _
    %v35 = vld [vmem:[%s1] sm:$0xff]
    %v36 = vld [vmem:[%s1 + $0x8] sm:$0xff]
    %v37 = vld [vmem:[%s1 + $0x10] sm:$0xff]
    %v38 = vld [vmem:[%s1 + $0x18] sm:$0xff]
    %v39 = vld [vmem:[%s1 + $0x20] sm:$0xff]
    %v40 = vld [vmem:[%s1 + $0x28] sm:$0xff]
    %v41 = vld [vmem:[%s1 + $0x30] sm:$0xff]
    %v42 = vld [vmem:[%s1 + $0x38] sm:$0xff]
    %v43 = vld [vmem:[%s1 + $0x40] sm:$0xff]
    %v44 = vld [vmem:[%s1 + $0x48] sm:$0xff]
    %v45 = vld [vmem:[%s1 + $0x50] sm:$0xff]
    %v46 = vld [vmem:[%s1 + $0x58] sm:$0xff]
    %v47 = vld [vmem:[%s1 + $0x60] sm:$0xff]
    %v48 = vld [vmem:[%s1 + $0x68] sm:$0xff]
    %v49 = vld [vmem:[%s1 + $0x70] sm:$0xff]
    %v50 = vld [vmem:[%s1 + $0x78] sm:$0xff]
    %v51 = vld [vmem:[%s0] sm:$0xff]
    %v52 = vld [vmem:[%s0 + $0x8] sm:$0xff]
    %v53 = vld [vmem:[%s0 + $0x10] sm:$0xff]
    %v54 = vld [vmem:[%s0 + $0x18] sm:$0xff]
    %v55 = vld [vmem:[%s0 + $0x20] sm:$0xff]
    %v56 = vld [vmem:[%s0 + $0x28] sm:$0xff]
    %v57 = vld [vmem:[%s0 + $0x30] sm:$0xff]
    %v58 = vld [vmem:[%s0 + $0x38] sm:$0xff]
    %v59 = vld [vmem:[%s0 + $0x40] sm:$0xff]
    %v60 = vld [vmem:[%s2] sm:$0xff]
    %v61 = vld [vmem:[%s2 + $0x8] sm:$0xff]
    %v62 = vld [vmem:[%s2 + $0x10] sm:$0xff]
    %v63 = vld [vmem:[%s2 + $0x18] sm:$0xff]
    %v64 = vld [vmem:[%s2 + $0x20] sm:$0xff]
    %v65 = vld [vmem:[%s2 + $0x28] sm:$0xff]
    %v66 = vld [vmem:[%s2 + $0x30] sm:$0xff]
    %v67 = vld [vmem:[%s2 + $0x38] sm:$0xff]
    %v68 = vld [vmem:[%s2 + $0x40] sm:$0xff]
    %v69 = vld [vmem:[%s2 + $0x48] sm:$0xff]
    %v70 = vld [vmem:[%s2 + $0x50] sm:$0xff]
    %v71 = vld [vmem:[%s2 + $0x58] sm:$0xff]
    %v72 = vld [vmem:[%s2 + $0x60] sm:$0xff]
    %v73 = vld [vmem:[%s2 + $0x68] sm:$0xff]
    %v74 = vld [vmem:[%s2 + $0x70] sm:$0xff]
    %v75 = vld [vmem:[%s2 + $0x78] sm:$0xff]
    %77 = vset.pattern.permute.xlu0 0
    %78 = vperm.xlu0 %77, %v60
    %v79 = vpop.permute.xlu0 %78
    %82 = vset.pattern.permute.xlu0 0
    %83 = vperm.xlu0 %82, %v61
    %v84 = vpop.permute.xlu0 %83
    %87 = vset.pattern.permute.xlu0 0
    %88 = vperm.xlu0 %87, %v62
    %v89 = vpop.permute.xlu0 %88
    %92 = vset.pattern.permute.xlu0 0
    %93 = vperm.xlu0 %92, %v63
    %v94 = vpop.permute.xlu0 %93
    %97 = vset.pattern.permute.xlu0 0
    %98 = vperm.xlu0 %97, %v64
    %v99 = vpop.permute.xlu0 %98
    %102 = vset.pattern.permute.xlu0 0
    %103 = vperm.xlu0 %102, %v65
    %v104 = vpop.permute.xlu0 %103
    %107 = vset.pattern.permute.xlu0 0
    %108 = vperm.xlu0 %107, %v66
    %v109 = vpop.permute.xlu0 %108
    %112 = vset.pattern.permute.xlu0 0
    %113 = vperm.xlu0 %112, %v67
    %v114 = vpop.permute.xlu0 %113
    %117 = vset.pattern.permute.xlu0 0
    %118 = vperm.xlu0 %117, %v68
    %v119 = vpop.permute.xlu0 %118
    %122 = vset.pattern.permute.xlu0 0
    %123 = vperm.xlu0 %122, %v69
    %v124 = vpop.permute.xlu0 %123
    %127 = vset.pattern.permute.xlu0 0
    %128 = vperm.xlu0 %127, %v70
    %v129 = vpop.permute.xlu0 %128
    %132 = vset.pattern.permute.xlu0 0
    %133 = vperm.xlu0 %132, %v71
    %v134 = vpop.permute.xlu0 %133
    %137 = vset.pattern.permute.xlu0 0
    %138 = vperm.xlu0 %137, %v72
    %v139 = vpop.permute.xlu0 %138
    %142 = vset.pattern.permute.xlu0 0
    %143 = vperm.xlu0 %142, %v73
    %v144 = vpop.permute.xlu0 %143
    %147 = vset.pattern.permute.xlu0 0
    %148 = vperm.xlu0 %147, %v74
    %v149 = vpop.permute.xlu0 %148
    %152 = vset.pattern.permute.xlu0 0
    %153 = vperm.xlu0 %152, %v75
    %v154 = vpop.permute.xlu0 %153
    %vm156 = vcmask 588800
    %v158 = vsel %vm156, %v35, 0
    %v161 = vsel %vm156, %v36, 0
    %v164 = vsel %vm156, %v37, 0
    %v167 = vsel %vm156, %v38, 0
    %v170 = vsel %vm156, %v39, 0
    %v173 = vsel %vm156, %v40, 0
    %v176 = vsel %vm156, %v41, 0
    %v179 = vsel %vm156, %v42, 0
    %v182 = vsel %vm156, %v43, 0
    %v185 = vsel %vm156, %v44, 0
    %v188 = vsel %vm156, %v45, 0
    %v191 = vsel %vm156, %v46, 0
    %v194 = vsel %vm156, %v47, 0
    %v197 = vsel %vm156, %v48, 0
    %v200 = vsel %vm156, %v49, 0
    %v203 = vsel %vm156, %v50, 0
    %205 = vmatprep.subr.mxu0 0.0
    %206 = vmatpush1.msra.mxu0 %v51
    %207 = vmatprep.subr.mxu0 0.0
    %208 = vmatpush1.msra.mxu0 %v52
    %209 = vmatprep.subr.mxu0 0.0
    %210 = vmatpush1.msra.mxu0 %v53
    %211 = vmatprep.subr.mxu0 0.0
    %212 = vmatpush1.msra.mxu0 %v54
    %213 = vmatprep.subr.mxu0 0.0
    %214 = vmatpush1.msra.mxu0 %v55
    %215 = vmatprep.subr.mxu0 0.0
    %216 = vmatpush1.msra.mxu0 %v56
    %217 = vmatprep.subr.mxu0 0.0
    %218 = vmatpush1.msra.mxu0 %v57
    %219 = vmatprep.subr.mxu0 0.0
    %220 = vmatpush1.msra.mxu0 %v58
    %221 = vmatprep.subr.mxu0 0.0
    %222 = vmatpush1.msra.mxu0 %v59
    %223 = vmatprep.subr.mxu0 0.0
    %224 = vmatpush1.msra.mxu0 0.0
    %225 = vmatprep.subr.mxu0 0.0
    %226 = vmatpush1.msra.mxu0 0.0
    %227 = vmatprep.subr.mxu0 0.0
    %228 = vmatpush1.msra.mxu0 0.0
    %229 = vmatprep.subr.mxu0 0.0
    %230 = vmatpush1.msra.mxu0 0.0
    %231 = vmatprep.subr.mxu0 0.0
    %232 = vmatpush1.msra.mxu0 0.0
    %233 = vmatprep.subr.mxu0 0.0
    %234 = vmatpush1.msra.mxu0 0.0
    %235 = vmatprep.subr.mxu0 0.0
    %236 = vmatpush1.msra.mxu0 0.0
    %237 = vmatprep.subr.mxu0 0.0
    %238 = vmatpush1.msra.mxu0 0.0
    %239 = vmatprep.subr.mxu0 0.0
    %240 = vmatpush1.msra.mxu0 0.0
    %241 = vmatprep.subr.mxu0 0.0
    %242 = vmatpush1.msra.mxu0 0.0
    %243 = vmatprep.subr.mxu0 0.0
    %244 = vmatpush1.msra.mxu0 0.0
    %245 = vmatprep.subr.mxu0 0.0
    %246 = vmatpush1.msra.mxu0 0.0
    %247 = vmatprep.subr.mxu0 0.0
    %248 = vmatpush1.msra.mxu0 0.0
    %249 = vmatprep.subr.mxu0 0.0
    %250 = vmatpush1.msra.mxu0 0.0
    %251 = vmatprep.subr.mxu0 0.0
    %252 = vmatpush1.msra.mxu0 0.0
    %253 = vmatprep.subr.mxu0 0.0
    %254 = vmatpush1.msra.mxu0 0.0
    %255 = vmatprep.subr.mxu0 0.0
    %256 = vmatpush1.msra.mxu0 0.0
    %257 = vmatprep.subr.mxu0 0.0
    %258 = vmatpush1.msra.mxu0 0.0
    %259 = vmatprep.subr.mxu0 0.0
    %260 = vmatpush1.msra.mxu0 0.0
    %261 = vmatprep.subr.mxu0 0.0
    %262 = vmatpush1.msra.mxu0 0.0
    %263 = vmatprep.subr.mxu0 0.0
    %264 = vmatpush1.msra.mxu0 0.0
    %265 = vmatprep.subr.mxu0 0.0
    %266 = vmatpush1.msra.mxu0 0.0
    %267 = vmatprep.subr.mxu0 0.0
    %268 = vmatpush1.msra.mxu0 0.0
    %269 = vmatprep.mubr.f32.mxu0 0.0
    %270 = vmatmul.mubr.f32.gmra.mrb[0].mxu0 %v158
    %v271 = vpop.f32.mrb[0].mxu0
    %v272 = vadd.f32 %v79, %v271
    %v273 = vpop.f32.mrb[0].mxu0
    %274 = vmatprep.mubr.f32.mxu0 0.0
    %275 = vmatmul.mubr.f32.gmra.mrb[0].mxu0 %v161
    %v276 = vpop.f32.mrb[0].mxu0
    %v277 = vadd.f32 %v84, %v276
    %v278 = vpop.f32.mrb[0].mxu0
    %279 = vmatprep.mubr.f32.mxu0 0.0
    %280 = vmatmul.mubr.f32.gmra.mrb[0].mxu0 %v164
    %v281 = vpop.f32.mrb[0].mxu0
    %v282 = vadd.f32 %v89, %v281
    %v283 = vpop.f32.mrb[0].mxu0
    %284 = vmatprep.mubr.f32.mxu0 0.0
    %285 = vmatmul.mubr.f32.gmra.mrb[0].mxu0 %v167
    %v286 = vpop.f32.mrb[0].mxu0
    %v287 = vadd.f32 %v94, %v286
    %v288 = vpop.f32.mrb[0].mxu0
    %289 = vmatprep.mubr.f32.mxu0 0.0
    %290 = vmatmul.mubr.f32.gmra.mrb[0].mxu0 %v170
    %v291 = vpop.f32.mrb[0].mxu0
    %v292 = vadd.f32 %v99, %v291
    %v293 = vpop.f32.mrb[0].mxu0
    %294 = vmatprep.mubr.f32.mxu0 0.0
    %295 = vmatmul.mubr.f32.gmra.mrb[0].mxu0 %v173
    %v296 = vpop.f32.mrb[0].mxu0
    %v297 = vadd.f32 %v104, %v296
    %v298 = vpop.f32.mrb[0].mxu0
    %299 = vmatprep.mubr.f32.mxu0 0.0
    %300 = vmatmul.mubr.f32.gmra.mrb[0].mxu0 %v176
    %v301 = vpop.f32.mrb[0].mxu0
    %v302 = vadd.f32 %v109, %v301
    %v303 = vpop.f32.mrb[0].mxu0
    %304 = vmatprep.mubr.f32.mxu0 0.0
    %305 = vmatmul.mubr.f32.gmra.mrb[0].mxu0 %v179
    %v306 = vpop.f32.mrb[0].mxu0
    %v307 = vadd.f32 %v114, %v306
    %v308 = vpop.f32.mrb[0].mxu0
    %309 = vmatprep.mubr.f32.mxu0 0.0
    %310 = vmatmul.mubr.f32.gmra.mrb[0].mxu0 %v182
    %v311 = vpop.f32.mrb[0].mxu0
    %v312 = vadd.f32 %v119, %v311
    %v313 = vpop.f32.mrb[0].mxu0
    %314 = vmatprep.mubr.f32.mxu0 0.0
    %315 = vmatmul.mubr.f32.gmra.mrb[0].mxu0 %v185
    %v316 = vpop.f32.mrb[0].mxu0
    %v317 = vadd.f32 %v124, %v316
    %v318 = vpop.f32.mrb[0].mxu0
    %319 = vmatprep.mubr.f32.mxu0 0.0
    %320 = vmatmul.mubr.f32.gmra.mrb[0].mxu0 %v188
    %v321 = vpop.f32.mrb[0].mxu0
    %v322 = vadd.f32 %v129, %v321
    %v323 = vpop.f32.mrb[0].mxu0
    %324 = vmatprep.mubr.f32.mxu0 0.0
    %325 = vmatmul.mubr.f32.gmra.mrb[0].mxu0 %v191
    %v326 = vpop.f32.mrb[0].mxu0
    %v327 = vadd.f32 %v134, %v326
    %v328 = vpop.f32.mrb[0].mxu0
    %329 = vmatprep.mubr.f32.mxu0 0.0
    %330 = vmatmul.mubr.f32.gmra.mrb[0].mxu0 %v194
    %v331 = vpop.f32.mrb[0].mxu0
    %v332 = vadd.f32 %v139, %v331
    %v333 = vpop.f32.mrb[0].mxu0
    %334 = vmatprep.mubr.f32.mxu0 0.0
    %335 = vmatmul.mubr.f32.gmra.mrb[0].mxu0 %v197
    %v336 = vpop.f32.mrb[0].mxu0
    %v337 = vadd.f32 %v144, %v336
    %v338 = vpop.f32.mrb[0].mxu0
    %339 = vmatprep.mubr.f32.mxu0 0.0
    %340 = vmatmul.mubr.f32.gmra.mrb[0].mxu0 %v200
    %v341 = vpop.f32.mrb[0].mxu0
    %v342 = vadd.f32 %v149, %v341
    %v343 = vpop.f32.mrb[0].mxu0
    %344 = vmatprep.mubr.f32.mxu0 0.0
    %345 = vmatmul.mubr.f32.gmra.mrb[0].mxu0 %v203
    %v346 = vpop.f32.mrb[0].mxu0
    %v347 = vadd.f32 %v154, %v346
    %v348 = vpop.f32.mrb[0].mxu0
    %349 = vdwg.mxu0
    %v350 = vmax.f32 %v272, 0.0
    %v351 = vmax.f32 %v277, 0.0
    %v352 = vmax.f32 %v282, 0.0
    %v353 = vmax.f32 %v287, 0.0
    %v354 = vmax.f32 %v292, 0.0
    %v355 = vmax.f32 %v297, 0.0
    %v356 = vmax.f32 %v302, 0.0
    %v357 = vmax.f32 %v307, 0.0
    %v358 = vmax.f32 %v312, 0.0
    %v359 = vmax.f32 %v317, 0.0
    %v360 = vmax.f32 %v322, 0.0
    %v361 = vmax.f32 %v327, 0.0
    %v362 = vmax.f32 %v332, 0.0
    %v363 = vmax.f32 %v337, 0.0
    %v364 = vmax.f32 %v342, 0.0
    %v365 = vmax.f32 %v347, 0.0
    %v366 = vmax.f32 %v350, %v351
    %v367 = vmax.f32 %v352, %v353
    %v368 = vmax.f32 %v354, %v355
    %v369 = vmax.f32 %v356, %v357
    %v370 = vmax.f32 %v358, %v359
    %v371 = vmax.f32 %v360, %v361
    %v372 = vmax.f32 %v362, %v363
    %v373 = vmax.f32 %v364, %v365
    %v374 = vld [vmem:[%s3] sm:$0xff]
    %v375 = vld [vmem:[%s3 + $0x8] sm:$0xff]
    %v376 = vld [vmem:[%s3 + $0x10] sm:$0xff]
    %v377 = vld [vmem:[%s3 + $0x18] sm:$0xff]
    %v378 = vld [vmem:[%s4] sm:$0xff]
    %v379 = vld [vmem:[%s4 + $0x8] sm:$0xff]
    %v380 = vld [vmem:[%s4 + $0x10] sm:$0xff]
    %v381 = vld [vmem:[%s4 + $0x18] sm:$0xff]
    %383 = vset.pattern.permute.xlu0 0
    %384 = vperm.xlu0 %383, %v378
    %v385 = vpop.permute.xlu0 %384
    %388 = vset.pattern.permute.xlu0 0
    %389 = vperm.xlu0 %388, %v379
    %v390 = vpop.permute.xlu0 %389
    %393 = vset.pattern.permute.xlu0 0
    %394 = vperm.xlu0 %393, %v380
    %v395 = vpop.permute.xlu0 %394
    %398 = vset.pattern.permute.xlu0 0
    %399 = vperm.xlu0 %398, %v381
    %v400 = vpop.permute.xlu0 %399
    %vm402 = vcmask 523264
    %v404 = vsel %vm402, %v374, 0
    %v407 = vsel %vm402, %v375, 0
    %v410 = vsel %vm402, %v376, 0
    %v413 = vsel %vm402, %v377, 0
    %415 = vmatprep.subr.mxu0 0.0
    %416 = vmatpush1.msra.mxu0 %v366
    %417 = vmatprep.subr.mxu0 0.0
    %418 = vmatpush1.msra.mxu0 %v367
    %419 = vmatprep.subr.mxu0 0.0
    %420 = vmatpush1.msra.mxu0 %v368
    %421 = vmatprep.subr.mxu0 0.0
    %422 = vmatpush1.msra.mxu0 %v369
    %423 = vmatprep.subr.mxu0 0.0
    %424 = vmatpush1.msra.mxu0 %v370
    %425 = vmatprep.subr.mxu0 0.0
    %426 = vmatpush1.msra.mxu0 %v371
    %427 = vmatprep.subr.mxu0 0.0
    %428 = vmatpush1.msra.mxu0 %v372
    %429 = vmatprep.subr.mxu0 0.0
    %430 = vmatpush1.msra.mxu0 %v373
    %431 = vmatprep.subr.mxu0 0.0
    %432 = vmatpush1.msra.mxu0 0.0
    %433 = vmatprep.subr.mxu0 0.0
    %434 = vmatpush1.msra.mxu0 0.0
    %435 = vmatprep.subr.mxu0 0.0
    %436 = vmatpush1.msra.mxu0 0.0
    %437 = vmatprep.subr.mxu0 0.0
    %438 = vmatpush1.msra.mxu0 0.0
    %439 = vmatprep.subr.mxu0 0.0
    %440 = vmatpush1.msra.mxu0 0.0
    %441 = vmatprep.subr.mxu0 0.0
    %442 = vmatpush1.msra.mxu0 0.0
    %443 = vmatprep.subr.mxu0 0.0
    %444 = vmatpush1.msra.mxu0 0.0
    %445 = vmatprep.subr.mxu0 0.0
    %446 = vmatpush1.msra.mxu0 0.0
    %447 = vmatprep.subr.mxu0 0.0
    %448 = vmatpush1.msra.mxu0 0.0
    %449 = vmatprep.subr.mxu0 0.0
    %450 = vmatpush1.msra.mxu0 0.0
    %451 = vmatprep.subr.mxu0 0.0
    %452 = vmatpush1.msra.mxu0 0.0
    %453 = vmatprep.subr.mxu0 0.0
    %454 = vmatpush1.msra.mxu0 0.0
    %455 = vmatprep.subr.mxu0 0.0
    %456 = vmatpush1.msra.mxu0 0.0
    %457 = vmatprep.subr.mxu0 0.0
    %458 = vmatpush1.msra.mxu0 0.0
    %459 = vmatprep.subr.mxu0 0.0
    %460 = vmatpush1.msra.mxu0 0.0
    %461 = vmatprep.subr.mxu0 0.0
    %462 = vmatpush1.msra.mxu0 0.0
    %463 = vmatprep.subr.mxu0 0.0
    %464 = vmatpush1.msra.mxu0 0.0
    %465 = vmatprep.subr.mxu0 0.0
    %466 = vmatpush1.msra.mxu0 0.0
    %467 = vmatprep.subr.mxu0 0.0
    %468 = vmatpush1.msra.mxu0 0.0
    %469 = vmatprep.subr.mxu0 0.0
    %470 = vmatpush1.msra.mxu0 0.0
    %471 = vmatprep.subr.mxu0 0.0
    %472 = vmatpush1.msra.mxu0 0.0
    %473 = vmatprep.subr.mxu0 0.0
    %474 = vmatpush1.msra.mxu0 0.0
    %475 = vmatprep.subr.mxu0 0.0
    %476 = vmatpush1.msra.mxu0 0.0
    %477 = vmatprep.subr.mxu0 0.0
    %478 = vmatpush1.msra.mxu0 0.0
    %479 = vmatprep.mubr.f32.mxu0 0.0
    %480 = vmatmul.mubr.f32.gmra.mrb[0].mxu0 %v404
    %v481 = vpop.f32.mrb[0].mxu0
    %v482 = vadd.f32 %v385, %v481
    %v483 = vpop.f32.mrb[0].mxu0
    %484 = vmatprep.mubr.f32.mxu0 0.0
    %485 = vmatmul.mubr.f32.gmra.mrb[0].mxu0 %v407
    %v486 = vpop.f32.mrb[0].mxu0
    %v487 = vadd.f32 %v390, %v486
    %v488 = vpop.f32.mrb[0].mxu0
    %489 = vmatprep.mubr.f32.mxu0 0.0
    %490 = vmatmul.mubr.f32.gmra.mrb[0].mxu0 %v410
    %v491 = vpop.f32.mrb[0].mxu0
    %v492 = vadd.f32 %v395, %v491
    %v493 = vpop.f32.mrb[0].mxu0
    %494 = vmatprep.mubr.f32.mxu0 0.0
    %495 = vmatmul.mubr.f32.gmra.mrb[0].mxu0 %v413
    %v496 = vpop.f32.mrb[0].mxu0
    %v497 = vadd.f32 %v400, %v496
    %v498 = vpop.f32.mrb[0].mxu0
    %499 = vdwg.mxu0
    %v500 = vmax.f32 %v482, 0.0
    %v501 = vmax.f32 %v487, 0.0
    %v502 = vmax.f32 %v492, 0.0
    %v503 = vmax.f32 %v497, 0.0
    %v504 = vld [vmem:[%s5] sm:$0xff]
    %v505 = vld [vmem:[%s5 + $0x8] sm:$0xff]
    %v506 = vld [vmem:[%s6] sm:$0xff]
    %v507 = vld [vmem:[%s6 + $0x8] sm:$0xff]
    %509 = vset.pattern.permute.xlu0 0
    %510 = vperm.xlu0 %509, %v506
    %v511 = vpop.permute.xlu0 %510
    %514 = vset.pattern.permute.xlu0 0
    %515 = vperm.xlu0 %514, %v507
    %v516 = vpop.permute.xlu0 %515
    %vm518 = vcmask 261120
    %v520 = vsel %vm518, %v504, 0
    %v523 = vsel %vm518, %v505, 0
    %525 = vmatprep.subr.mxu0 0.0
    %526 = vmatpush1.msra.mxu0 %v500
    %527 = vmatprep.subr.mxu0 0.0
    %528 = vmatpush1.msra.mxu0 %v501
    %529 = vmatprep.subr.mxu0 0.0
    %530 = vmatpush1.msra.mxu0 %v502
    %531 = vmatprep.subr.mxu0 0.0
    %532 = vmatpush1.msra.mxu0 %v503
    %533 = vmatprep.subr.mxu0 0.0
    %534 = vmatpush1.msra.mxu0 0.0
    %535 = vmatprep.subr.mxu0 0.0
    %536 = vmatpush1.msra.mxu0 0.0
    %537 = vmatprep.subr.mxu0 0.0
    %538 = vmatpush1.msra.mxu0 0.0
    %539 = vmatprep.subr.mxu0 0.0
    %540 = vmatpush1.msra.mxu0 0.0
    %541 = vmatprep.subr.mxu0 0.0
    %542 = vmatpush1.msra.mxu0 0.0
    %543 = vmatprep.subr.mxu0 0.0
    %544 = vmatpush1.msra.mxu0 0.0
    %545 = vmatprep.subr.mxu0 0.0
    %546 = vmatpush1.msra.mxu0 0.0
    %547 = vmatprep.subr.mxu0 0.0
    %548 = vmatpush1.msra.mxu0 0.0
    %549 = vmatprep.subr.mxu0 0.0
    %550 = vmatpush1.msra.mxu0 0.0
    %551 = vmatprep.subr.mxu0 0.0
    %552 = vmatpush1.msra.mxu0 0.0
    %553 = vmatprep.subr.mxu0 0.0
    %554 = vmatpush1.msra.mxu0 0.0
    %555 = vmatprep.subr.mxu0 0.0
    %556 = vmatpush1.msra.mxu0 0.0
    %557 = vmatprep.subr.mxu0 0.0
    %558 = vmatpush1.msra.mxu0 0.0
    %559 = vmatprep.subr.mxu0 0.0
    %560 = vmatpush1.msra.mxu0 0.0
    %561 = vmatprep.subr.mxu0 0.0
    %562 = vmatpush1.msra.mxu0 0.0
    %563 = vmatprep.subr.mxu0 0.0
    %564 = vmatpush1.msra.mxu0 0.0
    %565 = vmatprep.subr.mxu0 0.0
    %566 = vmatpush1.msra.mxu0 0.0
    %567 = vmatprep.subr.mxu0 0.0
    %568 = vmatpush1.msra.mxu0 0.0
    %569 = vmatprep.subr.mxu0 0.0
    %570 = vmatpush1.msra.mxu0 0.0
    %571 = vmatprep.subr.mxu0 0.0
    %572 = vmatpush1.msra.mxu0 0.0
    %573 = vmatprep.subr.mxu0 0.0
    %574 = vmatpush1.msra.mxu0 0.0
    %575 = vmatprep.subr.mxu0 0.0
    %576 = vmatpush1.msra.mxu0 0.0
    %577 = vmatprep.subr.mxu0 0.0
    %578 = vmatpush1.msra.mxu0 0.0
    %579 = vmatprep.subr.mxu0 0.0
    %580 = vmatpush1.msra.mxu0 0.0
    %581 = vmatprep.subr.mxu0 0.0
    %582 = vmatpush1.msra.mxu0 0.0
    %583 = vmatprep.subr.mxu0 0.0
    %584 = vmatpush1.msra.mxu0 0.0
    %585 = vmatprep.subr.mxu0 0.0
    %586 = vmatpush1.msra.mxu0 0.0
    %587 = vmatprep.subr.mxu0 0.0
    %588 = vmatpush1.msra.mxu0 0.0
    %589 = vmatprep.mubr.f32.mxu0 0.0
    %590 = vmatmul.mubr.f32.gmra.mrb[0].mxu0 %v520
    %v591 = vpop.f32.mrb[0].mxu0
    %v592 = vadd.f32 %v511, %v591
    %v593 = vpop.f32.mrb[0].mxu0
    %594 = vmatprep.mubr.f32.mxu0 0.0
    %595 = vmatmul.mubr.f32.gmra.mrb[0].mxu0 %v523
    %v596 = vpop.f32.mrb[0].mxu0
    %v597 = vadd.f32 %v516, %v596
    %v598 = vpop.f32.mrb[0].mxu0
    %599 = vdwg.mxu0
    %v600 = vmax.f32 %v592, 0.0
    %v601 = vmax.f32 %v597, 0.0
    %v602 = vld [vmem:[%s7] sm:$0x1]
    %v603 = vld [vmem:[#allocation2] sm:$0x1]
    %605 = vset.pattern.permute.xlu0 0
    %606 = vperm.xlu0 %605, %v603
    %v607 = vpop.permute.xlu0 %606
    %v609 = vlaneseq
    %v610 = vshrl.u32 %v609, 7
    %v611 = vsub.s32 0, %v610
    %v612 = vrot.slane %v607, %v611
    %vm613 = vcmask 130048
    %v615 = vsel %vm613, %v602, 0
    %617 = vmatprep.subr.mxu0 0.0
    %618 = vmatpush1.msra.mxu0 %v600
    %619 = vmatprep.subr.mxu0 0.0
    %620 = vmatpush1.msra.mxu0 %v601
    %621 = vmatprep.subr.mxu0 0.0
    %622 = vmatpush1.msra.mxu0 0.0
    %623 = vmatprep.subr.mxu0 0.0
    %624 = vmatpush1.msra.mxu0 0.0
    %625 = vmatprep.subr.mxu0 0.0
    %626 = vmatpush1.msra.mxu0 0.0
    %627 = vmatprep.subr.mxu0 0.0
    %628 = vmatpush1.msra.mxu0 0.0
    %629 = vmatprep.subr.mxu0 0.0
    %630 = vmatpush1.msra.mxu0 0.0
    %631 = vmatprep.subr.mxu0 0.0
    %632 = vmatpush1.msra.mxu0 0.0
    %633 = vmatprep.subr.mxu0 0.0
    %634 = vmatpush1.msra.mxu0 0.0
    %635 = vmatprep.subr.mxu0 0.0
    %636 = vmatpush1.msra.mxu0 0.0
    %637 = vmatprep.subr.mxu0 0.0
    %638 = vmatpush1.msra.mxu0 0.0
    %639 = vmatprep.subr.mxu0 0.0
    %640 = vmatpush1.msra.mxu0 0.0
    %641 = vmatprep.subr.mxu0 0.0
    %642 = vmatpush1.msra.mxu0 0.0
    %643 = vmatprep.subr.mxu0 0.0
    %644 = vmatpush1.msra.mxu0 0.0
    %645 = vmatprep.subr.mxu0 0.0
    %646 = vmatpush1.msra.mxu0 0.0
    %647 = vmatprep.subr.mxu0 0.0
    %648 = vmatpush1.msra.mxu0 0.0
    %649 = vmatprep.subr.mxu0 0.0
    %650 = vmatpush1.msra.mxu0 0.0
    %651 = vmatprep.subr.mxu0 0.0
    %652 = vmatpush1.msra.mxu0 0.0
    %653 = vmatprep.subr.mxu0 0.0
    %654 = vmatpush1.msra.mxu0 0.0
    %655 = vmatprep.subr.mxu0 0.0
    %656 = vmatpush1.msra.mxu0 0.0
    %657 = vmatprep.subr.mxu0 0.0
    %658 = vmatpush1.msra.mxu0 0.0
    %659 = vmatprep.subr.mxu0 0.0
    %660 = vmatpush1.msra.mxu0 0.0
    %661 = vmatprep.subr.mxu0 0.0
    %662 = vmatpush1.msra.mxu0 0.0
    %663 = vmatprep.subr.mxu0 0.0
    %664 = vmatpush1.msra.mxu0 0.0
    %665 = vmatprep.subr.mxu0 0.0
    %666 = vmatpush1.msra.mxu0 0.0
    %667 = vmatprep.subr.mxu0 0.0
    %668 = vmatpush1.msra.mxu0 0.0
    %669 = vmatprep.subr.mxu0 0.0
    %670 = vmatpush1.msra.mxu0 0.0
    %671 = vmatprep.subr.mxu0 0.0
    %672 = vmatpush1.msra.mxu0 0.0
    %673 = vmatprep.subr.mxu0 0.0
    %674 = vmatpush1.msra.mxu0 0.0
    %675 = vmatprep.subr.mxu0 0.0
    %676 = vmatpush1.msra.mxu0 0.0
    %677 = vmatprep.subr.mxu0 0.0
    %678 = vmatpush1.msra.mxu0 0.0
    %679 = vmatprep.subr.mxu0 0.0
    %680 = vmatpush1.msra.mxu0 0.0
    %681 = vmatprep.mubr.f32.mxu0 0.0
    %682 = vmatmul.mubr.f32.gmra.mrb[0].mxu0 %v615
    %v683 = vpop.f32.mrb[0].mxu0
    %v684 = vadd.f32 %v612, %v683
    %v685 = vpop.f32.mrb[0].mxu0
    %686 = vdwg.mxu0
    %687 = vst [vmem:[#allocation3] sm:$0x1] %v684
    // Predicated region
    $region38: #{tpu_custom_call.1} parent=1 // pred_check
      _
    $region39: #{tpu_custom_call.1} parent=1 // pred_check_branch
      %689 = sbr.rel (0) target = $region41
    $region40: #{tpu_custom_call.1} parent=1 // pred_region
      %s691 = ssub.s32 16, 16
      %692 = vsyncadd [#allocation4], %s691
      %s694 = sshll.u32 [#allocation3], 4
      %s695 = int_to_ptr.vmem [resolvable:$true] %s694
      %697 = dma.vmem_to_hbm [thread:$0]  %s695, 16, %s9, [#allocation4]
    $region41: #{tpu_custom_call.1} parent=1 // pred_fallthru
      _
    // Predicated region
    $region42: #{tpu_custom_call.1} parent=1 // pred_check
      _
    $region43: #{tpu_custom_call.1} parent=1 // pred_check_branch
      %699 = sbr.rel (0) target = $region45
    $region44: #{tpu_custom_call.1} parent=1 // pred_region
      %700 = dma.done [#allocation4], 16
    $region45: #{tpu_custom_call.1} parent=1 // pred_fallthru
      _
    %701 = vsyncpa [#allocation4], 1

</llo_original>
